<compile_context>
chip_gen: v5e
topology: v5e:2x2
jax: 0.10.0
libtpu: 0.0.40
codegen_flags: <defaults>
</compile_context>

<pallas_src>
import jax
import jax.numpy as jnp
import numpy as np
from jax.experimental import pallas as pl
from jax.experimental.pallas import tpu as pltpu


def _round_up(x, m):
    return (x + m - 1) // m * m


# --------------------------------------------------------------------------- #
# Kernels
# --------------------------------------------------------------------------- #
def _mlp(obs_ref, w1_ref, b1_ref, w2_ref, b2_ref):
    """relu(obs @ W1 + b1) @ W2_eff + b2_eff  ->  dueling q, (TB, A_pad) f32."""
    x = obs_ref[...].astype(jnp.float32)          # obs streamed as bf16, compute f32
    h = jnp.dot(x, w1_ref[...], preferred_element_type=jnp.float32) + b1_ref[...]
    h = jnp.maximum(h, 0.0)
    return jnp.dot(h, w2_ref[...], preferred_element_type=jnp.float32) + b2_ref[...]


def _q_table_kernel(obs_ref, w1_ref, b1_ref, w2_ref, b2_ref, q_ref):
    """action=None variant: lane-dense (TB, A_pad) q table (wrapper slices :A)."""
    q_ref[...] = _mlp(obs_ref, w1_ref, b1_ref, w2_ref, b2_ref)


def _q_gather_kernel(obs_ref, w1_ref, b1_ref, w2_ref, b2_ref, act_ref, out_ref):
    """Integer-action variant: only the gathered value, as a lane-dense row.

    one-hot mask (VPU) then ones(8,A_pad) @ (q*onehot)^T on the MXU produces an
    (8, TB) block whose every row is q[b, action[b]] laid out along lanes --
    no sublane->lane relayout, one dense store, ~32 B/row HBM writeback.
    """
    q = _mlp(obs_ref, w1_ref, b1_ref, w2_ref, b2_ref)             # (TB, A_pad)
    ids = jax.lax.broadcasted_iota(jnp.int32, q.shape, 1)
    onehot = (ids == act_ref[...]).astype(jnp.float32)            # act is (TB, 1)
    qm = q * onehot                                               # 1 nonzero / row
    ones8 = jnp.ones((8, q.shape[1]), jnp.float32)
    sel = jax.lax.dot_general(ones8, qm, (((1,), (1,)), ((), ())),
                              preferred_element_type=jnp.float32)  # (8, TB)
    out_ref[...] = sel


# --------------------------------------------------------------------------- #
# Wrapper
# --------------------------------------------------------------------------- #
def _fold_dueling(w2, b2):
    """Fold 'adv - mean(adv) + v' into the output layer; pad to 128 lanes."""
    n_act = w2.shape[1] - 1
    w2_eff = w2[:, :n_act] - w2[:, :n_act].mean(axis=1, keepdims=True) + w2[:, n_act:]
    b2_eff = b2[:, :n_act] - b2[:, :n_act].mean(axis=1, keepdims=True) + b2[:, n_act:]
    n_pad = _round_up(n_act, 128)
    w2_eff = jnp.pad(w2_eff, ((0, 0), (0, n_pad - n_act)))
    b2_eff = jnp.pad(b2_eff, ((0, 0), (0, n_pad - n_act)))
    return w2_eff, b2_eff, n_act, n_pad


def _tile_batch(B, block_b):
    """Pick (TB, B_pad): 8-aligned single tile for tiny B, otherwise 128-aligned
    tiles with >= 2 grid steps so the 'parallel' batch axis can use both v7x TCs."""
    block_b = max(128, _round_up(block_b, 128))
    if B <= 128:
        TB = _round_up(B, 8)
        return TB, TB
    TB = min(block_b, _round_up(pl.cdiv(B, 2), 128))
    return TB, _round_up(B, TB)


def qcritic_forward(obs, params, action=None, *, block_b=1024):
    """Dueling Q forward. obs: (B, obs_dim) f32. action: (B,) int or None."""
    w1, b1, w2, b2 = params
    B, obs_dim = obs.shape
    hidden = w1.shape[1]

    w1 = w1.astype(jnp.float32)
    b1 = b1.reshape(1, hidden).astype(jnp.float32)
    w2_eff, b2_eff, n_act, n_pad = _fold_dueling(
        w2.astype(jnp.float32), b2.reshape(1, -1).astype(jnp.float32))

    TB, B_pad = _tile_batch(B, block_b)
    grid = (B_pad // TB,)

    obs_bf16 = obs.astype(jnp.bfloat16)           # halve obs HBM streaming bytes
    if B_pad != B:
        obs_bf16 = jnp.pad(obs_bf16, ((0, B_pad - B), (0, 0)))

    obs_spec = pl.BlockSpec((TB, obs_dim), lambda i: (i, 0))
    resident = lambda a: pl.BlockSpec(a.shape, lambda i: (0, 0))   # stays in VMEM
    weight_specs = [resident(w1), resident(b1), resident(w2_eff), resident(b2_eff)]
    cparams = pltpu.CompilerParams(
        dimension_semantics=("parallel",),
        vmem_limit_bytes=48 * 1024 * 1024)

    flops = 2 * B_pad * (obs_dim * hidden + hidden * n_pad)
    param_bytes = 4 * (obs_dim * hidden + hidden + hidden * n_pad + n_pad)
    obs_bytes = B_pad * obs_dim * 2

    if action is None:
        cost = pl.CostEstimate(
            flops=flops, transcendentals=0,
            bytes_accessed=obs_bytes + param_bytes + B_pad * n_pad * 4)
        q = pl.pallas_call(
            _q_table_kernel,
            grid=grid,
            in_specs=[obs_spec] + weight_specs,
            out_specs=pl.BlockSpec((TB, n_pad), lambda i: (i, 0)),
            out_shape=jax.ShapeDtypeStruct((B_pad, n_pad), jnp.float32),
            compiler_params=cparams,
            cost_estimate=cost,
        )(obs_bf16, w1, b1, w2_eff, b2_eff)
        return q[:B, :n_act]                      # (B, A)

    act = action.reshape(B, 1).astype(jnp.int32)
    if B_pad != B:
        act = jnp.pad(act, ((0, B_pad - B), (0, 0)))
    cost = pl.CostEstimate(
        flops=flops + 2 * 8 * n_pad * B_pad, transcendentals=0,
        bytes_accessed=obs_bytes + param_bytes + B_pad * 4 + 8 * B_pad * 4)
    out = pl.pallas_call(
        _q_gather_kernel,
        grid=grid,
        in_specs=[obs_spec] + weight_specs
                 + [pl.BlockSpec((TB, 1), lambda i: (i, 0))],
        out_specs=pl.BlockSpec((8, TB), lambda i: (0, i)),
        out_shape=jax.ShapeDtypeStruct((8, B_pad), jnp.float32),
        compiler_params=cparams,
        cost_estimate=cost,
    )(obs_bf16, w1, b1, w2_eff, b2_eff, act)
    return out[0, :B]                             # (B,)  == torch .squeeze(dim=1)


# --------------------------------------------------------------------------- #
# Params / reference / test
# --------------------------------------------------------------------------- #
def init_params(key, obs_dim, hidden, n_actions):
    k1, k2 = jax.random.split(key)
    out_dim = n_actions + 1  # dueling head: advantages + value
    w1 = jax.random.normal(k1, (obs_dim, hidden), jnp.float32) * 0.1
    b1 = jnp.zeros((1, hidden), jnp.float32)
    w2 = jax.random.normal(k2, (hidden, out_dim), jnp.float32) * 0.1
    b2 = jnp.zeros((1, out_dim), jnp.float32)
    return w1, b1, w2, b2


def _reference(obs, params, action=None):
    w1, b1, w2, b2 = params
    h = jnp.maximum(obs @ w1 + b1, 0.0)
    logits = h @ w2 + b2
    v = logits[:, -1:]
    adv = logits[:, :-1]
    q = adv - adv.mean(axis=1, keepdims=True) + v
    if action is None:
        return q
    return jnp.take_along_axis(
        q, action.reshape(-1, 1).astype(jnp.int32), axis=1)[:, 0]


if __name__ == "__main__":
    key = jax.random.PRNGKey(0)
    k_obs, k_act, k_par, k_obs2, k_act2 = jax.random.split(key, 5)

    fwd = jax.jit(qcritic_forward, static_argnames=("block_b",))
    # bf16 obs streaming -> tolerance-level drift vs the f32 reference.
    RTOL = ATOL = 2e-2

    # Small test (single grid step).
    B, OBS_DIM, HIDDEN, N_ACTIONS = 8, 32, 64, 7
    obs = jax.random.normal(k_obs, (B, OBS_DIM), jnp.float32)
    action = jax.random.randint(k_act, (B,), 0, N_ACTIONS, jnp.int32)
    params = init_params(k_par, OBS_DIM, HIDDEN, N_ACTIONS)

    q_all = fwd(obs, params)                      # (B, A)
    q_act = fwd(obs, params, action)              # (B,)
    jax.block_until_ready((q_all, q_act))

    np.testing.assert_allclose(np.asarray(q_all),
                               np.asarray(_reference(obs, params, None)),
                               rtol=RTOL, atol=ATOL)
    np.testing.assert_allclose(np.asarray(q_act),
                               np.asarray(_reference(obs, params, action)),
                               rtol=RTOL, atol=ATOL)
    assert q_all.shape == (B, N_ACTIONS)
    assert q_act.shape == (B,)

    # Multi-tile test: batch not a multiple of the tile -> pad + 2-step grid.
    B2 = 200
    obs2 = jax.random.normal(k_obs2, (B2, OBS_DIM), jnp.float32)
    action2 = jax.random.randint(k_act2, (B2,), 0, N_ACTIONS, jnp.int32)

    q_all2 = fwd(obs2, params, block_b=64)
    q_act2 = fwd(obs2, params, action2, block_b=64)
    jax.block_until_ready((q_all2, q_act2))

    np.testing.assert_allclose(np.asarray(q_all2),
                               np.asarray(_reference(obs2, params, None)),
                               rtol=RTOL, atol=ATOL)
    np.testing.assert_allclose(np.asarray(q_act2),
                               np.asarray(_reference(obs2, params, action2)),
                               rtol=RTOL, atol=ATOL)
    assert q_all2.shape == (B2, N_ACTIONS)
    assert q_act2.shape == (B2,)

    print("KERNEL_OK")
</pallas_src>

<mosaic_0001>
module attributes {stable_mosaic.version = 11 : i64} {
  func.func @_q_table_kernel(%arg0: i32, %arg1: memref<8x32xbf16, #tpu.memory_space<vmem>>, %arg2: memref<32x64xf32, #tpu.memory_space<vmem>>, %arg3: memref<1x64xf32, #tpu.memory_space<vmem>>, %arg4: memref<64x128xf32, #tpu.memory_space<vmem>>, %arg5: memref<1x128xf32, #tpu.memory_space<vmem>>, %arg6: memref<8x128xf32, #tpu.memory_space<vmem>>) attributes {dimension_semantics = [#tpu.dimension_semantics<parallel>], iteration_bounds = array<i64: 1>, scalar_prefetch = 0 : i64, scratch_operands = 0 : i64, tpu.core_type = #tpu.core_type<tc>, window_params = [{transform_indices = @transform_0, window_bounds = array<i64: 8, 32>}, {pipeline_mode = #tpu.pipeline_mode<synchronous>, transform_indices = @transform_1, window_bounds = array<i64: 32, 64>}, {pipeline_mode = #tpu.pipeline_mode<synchronous>, transform_indices = @transform_2, window_bounds = array<i64: 1, 64>}, {pipeline_mode = #tpu.pipeline_mode<synchronous>, transform_indices = @transform_3, window_bounds = array<i64: 64, 128>}, {pipeline_mode = #tpu.pipeline_mode<synchronous>, transform_indices = @transform_4, window_bounds = array<i64: 1, 128>}, {transform_indices = @transform_5, window_bounds = array<i64: 8, 128>}]} {
    %c0 = arith.constant 0 : index
    %c0_0 = arith.constant 0 : index
    %0 = vector.load %arg1[%c0, %c0_0] : memref<8x32xbf16, #tpu.memory_space<vmem>>, vector<8x32xbf16>
    %1 = arith.extf %0 : vector<8x32xbf16> to vector<8x32xf32>
    %c0_1 = arith.constant 0 : index
    %c0_2 = arith.constant 0 : index
    %2 = vector.load %arg2[%c0_1, %c0_2] : memref<32x64xf32, #tpu.memory_space<vmem>>, vector<32x64xf32>
    %cst = arith.constant dense<0.000000e+00> : vector<8x64xf32>
    %3 = tpu.matmul %1, %2, %cst {dimension_numbers = #tpu.dot_dimension_numbers<[1], [0], [0], [1], [0, 0, 1, 1], [], []>} : vector<8x32xf32>, vector<32x64xf32>, vector<8x64xf32> -> vector<8x64xf32>
    %c0_3 = arith.constant 0 : index
    %c0_4 = arith.constant 0 : index
    %4 = vector.load %arg3[%c0_3, %c0_4] : memref<1x64xf32, #tpu.memory_space<vmem>>, vector<1x64xf32>
    %5 = vector.broadcast %4 : vector<1x64xf32> to vector<8x64xf32>
    %6 = arith.addf %3, %5 : vector<8x64xf32>
    %cst_5 = arith.constant 0.000000e+00 : f32
    %7 = vector.broadcast %cst_5 : f32 to vector<8x64xf32>
    %8 = arith.maximumf %6, %7 : vector<8x64xf32>
    %c0_6 = arith.constant 0 : index
    %c0_7 = arith.constant 0 : index
    %9 = vector.load %arg4[%c0_6, %c0_7] : memref<64x128xf32, #tpu.memory_space<vmem>>, vector<64x128xf32>
    %cst_8 = arith.constant dense<0.000000e+00> : vector<8x128xf32>
    %10 = tpu.matmul %8, %9, %cst_8 {dimension_numbers = #tpu.dot_dimension_numbers<[1], [0], [0], [1], [0, 0, 1, 1], [], []>} : vector<8x64xf32>, vector<64x128xf32>, vector<8x128xf32> -> vector<8x128xf32>
    %c0_9 = arith.constant 0 : index
    %c0_10 = arith.constant 0 : index
    %11 = vector.load %arg5[%c0_9, %c0_10] : memref<1x128xf32, #tpu.memory_space<vmem>>, vector<1x128xf32>
    %12 = vector.broadcast %11 : vector<1x128xf32> to vector<8x128xf32>
    %13 = arith.addf %10, %12 : vector<8x128xf32>
    %c0_11 = arith.constant 0 : index
    %c0_12 = arith.constant 0 : index
    %14 = vector.load %arg6[%c0_11, %c0_12] : memref<8x128xf32, #tpu.memory_space<vmem>>, vector<8x128xf32>
    tpu.vector_store %arg6[%c0_11, %c0_12], %13 {strides = array<i32>} : memref<8x128xf32, #tpu.memory_space<vmem>>, vector<8x128xf32>,
    return
  }
  func.func @transform_0(%arg0: i32) -> (i32, i32) {
    %c0_i32 = arith.constant 0 : i32
    %c0_i32_0 = arith.constant 0 : i32
    return %arg0, %c0_i32 : i32, i32
  }
  func.func @transform_1(%arg0: i32) -> (i32, i32) {
    %c0_i32 = arith.constant 0 : i32
    %c0_i32_0 = arith.constant 0 : i32
    %c0_i32_1 = arith.constant 0 : i32
    return %c0_i32, %c0_i32_0 : i32, i32
  }
  func.func @transform_2(%arg0: i32) -> (i32, i32) {
    %c0_i32 = arith.constant 0 : i32
    %c0_i32_0 = arith.constant 0 : i32
    %c0_i32_1 = arith.constant 0 : i32
    return %c0_i32, %c0_i32_0 : i32, i32
  }
  func.func @transform_3(%arg0: i32) -> (i32, i32) {
    %c0_i32 = arith.constant 0 : i32
    %c0_i32_0 = arith.constant 0 : i32
    %c0_i32_1 = arith.constant 0 : i32
    return %c0_i32, %c0_i32_0 : i32, i32
  }
  func.func @transform_4(%arg0: i32) -> (i32, i32) {
    %c0_i32 = arith.constant 0 : i32
    %c0_i32_0 = arith.constant 0 : i32
    %c0_i32_1 = arith.constant 0 : i32
    return %c0_i32, %c0_i32_0 : i32, i32
  }
  func.func @transform_5(%arg0: i32) -> (i32, i32) {
    %c0_i32 = arith.constant 0 : i32
    %c0_i32_0 = arith.constant 0 : i32
    return %arg0, %c0_i32 : i32, i32
  }
}

</mosaic_0001>

<llo_original>
// kernel: qcritic_forward.1
$region0: #{qcritic_forward.1}
  #allocation0 [shape = 'u32[]', space=smem, size = 0x4, offset = 0x4, fixed_abs, tag = 'smem constant byte address 0x4 - core index']
  #allocation1 [shape = 'u32[72,128]{1,0:T(1,128)}', space=vmem, size = 0x9000, scoped, tag = 'internal scratch']
  %s0 = inlined_call_operand.vmem [shape: bf16[8,32], index: 0, kind: input, shape index: {}]
  %s1 = inlined_call_operand.vmem [shape: f32[32,64], index: 1, kind: input, shape index: {}]
  %s2 = inlined_call_operand.vmem [shape: f32[1,64], index: 2, kind: input, shape index: {}]
  %s3 = inlined_call_operand.vmem [shape: f32[64,128], index: 3, kind: input, shape index: {}]
  %s4 = inlined_call_operand.vmem [shape: f32[1,128], index: 4, kind: input, shape index: {}]
  %s5 = inlined_call_operand.hbm [shape: f32[8,128], index: 5, kind: output, shape index: {}]
  %s6 = sld [smem:[#allocation0]]
  $region30: #{qcritic_forward.1} parent=0
    _
  %s8 = ssub.s32 1, %s6
  %s9 = scalar_select 0, %s8, %s6
  $region1: #{qcritic_forward.1} parent=0
    #allocation2 [shape = 'u8[4096]{0}', space=vmem, size = 0x1000, scoped, tag = 'output window, operand 0, single buffered']
    #allocation3 [shape = 's32[1]{0}', space=sflag, size = 0x4, scoped, tag = 'scoped memory for qcritic_forward.1']
    %10 = vsyncpa [#allocation3], 0
    // Predicated region
    $region2: #{qcritic_forward.1} parent=1 // pred_check
      _
    $region3: #{qcritic_forward.1} parent=1 // pred_check_branch
      %12 = sbr.rel (0) target = $region5
    $region4: #{qcritic_forward.1} parent=1 // pred_region
      _
    $region5: #{qcritic_forward.1} parent=1 // pred_fallthru
      _
    // Predicated region
    $region6: #{qcritic_forward.1} parent=1 // pred_check
      _
    $region7: #{qcritic_forward.1} parent=1 // pred_check_branch
      %14 = sbr.rel (0) target = $region9
    $region8: #{qcritic_forward.1} parent=1 // pred_region
      _
    $region9: #{qcritic_forward.1} parent=1 // pred_fallthru
      _
    // Predicated region
    $region10: #{qcritic_forward.1} parent=1 // pred_check
      _
    $region11: #{qcritic_forward.1} parent=1 // pred_check_branch
      %16 = sbr.rel (0) target = $region13
    $region12: #{qcritic_forward.1} parent=1 // pred_region
      _
    $region13: #{qcritic_forward.1} parent=1 // pred_fallthru
      _
    // Predicated region
    $region14: #{qcritic_forward.1} parent=1 // pred_check
      _
    $region15: #{qcritic_forward.1} parent=1 // pred_check_branch
      %18 = sbr.rel (0) target = $region17
    $region16: #{qcritic_forward.1} parent=1 // pred_region
      _
    $region17: #{qcritic_forward.1} parent=1 // pred_fallthru
      _
    // Predicated region
    $region18: #{qcritic_forward.1} parent=1 // pred_check
      _
    $region19: #{qcritic_forward.1} parent=1 // pred_check_branch
      %20 = sbr.rel (0) target = $region21
    $region20: #{qcritic_forward.1} parent=1 // pred_region
      _
    $region21: #{qcritic_forward.1} parent=1 // pred_fallthru
      _
    %v21 = vld [vmem:[%s0] sm:$0xf]
    %v22 = vunpack.c.l.bf16 %v21
    %v23 = vld [vmem:[%s1] sm:$0xff]
    %v24 = vld [vmem:[%s1 + $0x8] sm:$0xff]
    %v25 = vld [vmem:[%s1 + $0x10] sm:$0xff]
    %v26 = vld [vmem:[%s1 + $0x18] sm:$0xff]
    %v27 = vld [vmem:[%s2] sm:$0x1]
    %v29 = vperm.slane %v27, 0
    %vm31 = vcmask 261120
    %v33 = vsel %vm31, %v22, 0
    %35 = vmatpush.msra.mxu0 0.0
    %36 = vmatpush.msra.mxu0 0.0
    %37 = vmatpush.msra.mxu0 0.0
    %38 = vmatpush.msra.mxu0 0.0
    %39 = vmatpush.msra.mxu0 0.0
    %40 = vmatpush.msra.mxu0 0.0
    %41 = vmatpush.msra.mxu0 0.0
    %42 = vmatpush.msra.mxu0 0.0
    %43 = vmatpush.msra.mxu0 0.0
    %44 = vmatpush.msra.mxu0 0.0
    %45 = vmatpush.msra.mxu0 0.0
    %46 = vmatpush.msra.mxu0 0.0
    %47 = vmatpush.msra.mxu0 %v26
    %48 = vmatpush.msra.mxu0 %v25
    %49 = vmatpush.msra.mxu0 %v24
    %50 = vmatpush.msra.mxu0 %v23
    %51 = vmatmul.f32.gmra.mxu0 %v33
    %v52 = vpop.f32.mrf.mxu0
    %v53 = vadd.f32 %v29, %v52
    %54 = vdwg.mxu0
    %v55 = vmax.f32 %v53, 0.0
    %v56 = vld [vmem:[%s3] sm:$0xff]
    %v57 = vld [vmem:[%s3 + $0x8] sm:$0xff]
    %v58 = vld [vmem:[%s3 + $0x10] sm:$0xff]
    %v59 = vld [vmem:[%s3 + $0x18] sm:$0xff]
    %v60 = vld [vmem:[%s3 + $0x20] sm:$0xff]
    %v61 = vld [vmem:[%s3 + $0x28] sm:$0xff]
    %v62 = vld [vmem:[%s3 + $0x30] sm:$0xff]
    %v63 = vld [vmem:[%s3 + $0x38] sm:$0xff]
    %v64 = vld [vmem:[%s4] sm:$0x1]
    %v66 = vperm.slane %v64, 0
    %vm68 = vcmask 523264
    %v70 = vsel %vm68, %v55, 0
    %72 = vmatpush.msra.mxu0 0.0
    %73 = vmatpush.msra.mxu0 0.0
    %74 = vmatpush.msra.mxu0 0.0
    %75 = vmatpush.msra.mxu0 0.0
    %76 = vmatpush.msra.mxu0 0.0
    %77 = vmatpush.msra.mxu0 0.0
    %78 = vmatpush.msra.mxu0 0.0
    %79 = vmatpush.msra.mxu0 0.0
    %80 = vmatpush.msra.mxu0 %v63
    %81 = vmatpush.msra.mxu0 %v62
    %82 = vmatpush.msra.mxu0 %v61
    %83 = vmatpush.msra.mxu0 %v60
    %84 = vmatpush.msra.mxu0 %v59
    %85 = vmatpush.msra.mxu0 %v58
    %86 = vmatpush.msra.mxu0 %v57
    %87 = vmatpush.msra.mxu0 %v56
    %88 = vmatmul.f32.gmra.mxu0 %v70
    %v89 = vpop.f32.mrf.mxu0
    %v90 = vadd.f32 %v66, %v89
    %91 = vdwg.mxu0
    %92 = vst [vmem:[#allocation2] sm:$0xff] %v90
    // Predicated region
    $region22: #{qcritic_forward.1} parent=1 // pred_check
      _
    $region23: #{qcritic_forward.1} parent=1 // pred_check_branch
      %94 = sbr.rel (0) target = $region25
    $region24: #{qcritic_forward.1} parent=1 // pred_region
      %96 = vsyncadd [#allocation3], 0
      %s98 = sshll.u32 [#allocation2], 4
      %s99 = int_to_ptr.vmem [resolvable:$true] %s98
      %s100 = sshll.u32 %s5, 4
      %s101 = int_to_ptr.hbm [resolvable:$true] %s100
      %103 = dma.vmem_to_hbm [thread:$0]  %s99, 128, %s101, [#allocation3]
    $region25: #{qcritic_forward.1} parent=1 // pred_fallthru
      _
    // Predicated region
    $region26: #{qcritic_forward.1} parent=1 // pred_check
      _
    $region27: #{qcritic_forward.1} parent=1 // pred_check_branch
      %105 = sbr.rel (0) target = $region29
    $region28: #{qcritic_forward.1} parent=1 // pred_region
      %107 = dma.done [#allocation3], 128
    $region29: #{qcritic_forward.1} parent=1 // pred_fallthru
      _
    %108 = vsyncpa [#allocation3], 1

</llo_original>
